<compile_context>
chip_gen: v7x
topology: tpu7x:2x2x1
jax: 0.10.0
libtpu: 0.0.40
codegen_flags: <defaults>
</compile_context>

<pallas_src>
import functools
import math

import jax
import jax.numpy as jnp
from jax import lax
from jax.experimental import pallas as pl
from jax.experimental.pallas import tpu as pltpu

_LANES = 128
_SUBLANES = 8
_CHUNK_ROWS = 64  # rows per in-kernel chunk; multiple of 8/16/32 sublane packs


def _cdiv(a, b):
    return -(-a // b)


def _round_up(x, m):
    return _cdiv(x, m) * m


def _device_kind() -> str:
    try:
        return jax.devices()[0].device_kind.lower()
    except Exception:  # pragma: no cover - defensive (CPU/interpret etc.)
        return ""


def _per_generation_defaults(kind):
    """Returns (target_block_bytes per input, scoped vmem_limit_bytes)."""
    if ("v2" in kind) or ("v3" in kind):
        # Tiny (16 MiB) VMEM generations: keep blocks and scoped limit small.
        return 1 << 20, 12 << 20
    if ("v6" in kind) or ("v7" in kind) or ("tpu7" in kind) or ("7x" in kind):
        # v6e (~1.4 TB/s) / v7x (~3.2 TB/s per TC): 8 MiB blocks amortize the
        # ~0.35 us grid-step overhead to <10%; 2 inputs x 2 bufs x 8 MiB =
        # 32 MiB double-buffered footprint fits inside a 48 MiB scoped limit
        # (and v7x's 64 MiB physical VMEM).
        return 8 << 20, 48 << 20
    # v5e (~820 GB/s HBM) and unknown: 4 MiB already amortizes stepping to
    # ~3-5%; explicit vmem limit is mandatory on v5e (16 MiB scoped default).
    return 4 << 20, 48 << 20


def _num_tensorcores(kind):
    # v7x has 2 TensorCores per chip (and v4/v5p megacore presents 2 TCs per
    # device); a 2-wide "parallel" leading grid axis lets the runtime shard
    # the row range across them.  v5e / v6e are single-TC: a >1 part axis only
    # adds an extra writeback boundary, so collapse it to 1 there.
    if any(s in kind for s in ("v7", "tpu7", "7x", "v4", "v5p")):
        return 2
    return 1


def _center_loss_kernel(o_ref, t_ref, out_ref, *, valid_rows, block_rows,
                        chunk_rows, steps_per_part):
    c = pl.program_id(0)  # part axis ("parallel"): TC shard on multi-core chips
    k = pl.program_id(1)  # sequential reduction axis ("arbitrary")

    @pl.when(k == 0)
    def _():
        out_ref[...] = jnp.zeros_like(out_ref)

    # First global row this (c, k) step is responsible for.  The input
    # index_map clamps to the last in-bounds block, so trailing grid steps of
    # the last part may re-read an earlier block; the row mask below zeroes
    # their contribution (it also zeroes the undefined rows of the partial
    # last block).
    block_row0 = (c * steps_per_part + k) * block_rows

    n_chunks = block_rows // chunk_rows
    local_rows = lax.broadcasted_iota(jnp.int32, (chunk_rows, _LANES), 0)

    def chunk_body(ch, acc):
        r0 = pl.multiple_of(ch * chunk_rows, chunk_rows)
        o = o_ref[pl.ds(r0, chunk_rows), :].astype(jnp.float32)
        t = t_ref[pl.ds(r0, chunk_rows), :].astype(jnp.float32)
        d = o - t
        sq = d * d
        # Scalar threshold keeps the mask to one vcmp + one vsel per vreg.
        thresh = valid_rows - block_row0 - r0
        sq = jnp.where(local_rows < thresh, sq, 0.0)
        # (chunk_rows,128)->(chunk_rows//8,8,128) is layout-preserving for the
        # f32 intermediate; the axis-0 reduce is pure VPU vreg adds.
        return acc + jnp.sum(
            sq.reshape(chunk_rows // _SUBLANES, _SUBLANES, _LANES), axis=0)

    acc0 = jnp.zeros((_SUBLANES, _LANES), jnp.float32)
    acc = lax.fori_loop(0, n_chunks, chunk_body, acc0,
                        unroll=min(n_chunks, 8))
    out_ref[...] += acc


def center_loss(outputs, targets, *, target_block_bytes=None,
                vmem_limit_bytes=None, num_parts=None,
                min_pallas_elems=1 << 18):
    """Pallas implementation of CenterLoss.forward: MSE(reduction='sum') / B."""
    assert outputs.shape == targets.shape, (outputs.shape, targets.shape)
    batch = outputs.shape[0]
    total = math.prod(outputs.shape)

    if total < min_pallas_elems:
        # Tiny inputs: fixed pallas_call cost dwarfs the work; XLA's fused
        # reduce (also at the HBM roofline) is strictly faster.
        d = outputs.astype(jnp.float32) - targets.astype(jnp.float32)
        return jnp.sum(d * d) / batch

    kind = _device_kind()
    blk_default, vmem_default = _per_generation_defaults(kind)
    if target_block_bytes is None:
        target_block_bytes = blk_default
    if vmem_limit_bytes is None:
        vmem_limit_bytes = vmem_default
    if num_parts is None:
        num_parts = _num_tensorcores(kind)
    num_parts = max(1, int(num_parts))

    o_flat = outputs.reshape(-1)
    t_flat = targets.reshape(-1)

    # Lane alignment: the reshape to (rows, 128) is a free bitcast when
    # total % 128 == 0 (the common case -> zero extra HBM traffic).  Otherwise
    # a single 128-element-granular pad copy is made (zeros are exact for the
    # squared error).
    rem = total % _LANES
    if rem:
        pad = _LANES - rem
        o_flat = jnp.pad(o_flat, (0, pad))
        t_flat = jnp.pad(t_flat, (0, pad))
    rows = o_flat.shape[0] // _LANES
    o2 = o_flat.reshape(rows, _LANES)
    t2 = t_flat.reshape(rows, _LANES)

    # Block sizing: as large as the per-generation budget allows (amortizes the
    # ~0.35us grid-step overhead) but never bigger than one part's share.
    # 64-row granularity keeps f32/bf16/int8 sublane packing intact.
    elem_bytes = jnp.dtype(outputs.dtype).itemsize
    block_rows = (target_block_bytes // (elem_bytes * _LANES)) \
        // _CHUNK_ROWS * _CHUNK_ROWS
    block_rows = max(_CHUNK_ROWS, block_rows)
    per_part_rows = _round_up(_cdiv(rows, num_parts), _CHUNK_ROWS)
    block_rows = min(block_rows, per_part_rows)

    total_blocks = _cdiv(rows, block_rows)
    steps_per_part = _cdiv(total_blocks, num_parts)
    last_block = total_blocks - 1

    if num_parts * steps_per_part == total_blocks:
        in_map = lambda c, k: (c * steps_per_part + k, 0)
    else:
        # Trailing steps of the last part would index past the array: clamp
        # the DMA to the last in-bounds block (re-read, negligible) and let the
        # in-kernel row mask zero its contribution.
        in_map = lambda c, k: (jnp.minimum(c * steps_per_part + k, last_block), 0)

    kernel = functools.partial(
        _center_loss_kernel,
        valid_rows=rows, block_rows=block_rows,
        chunk_rows=_CHUNK_ROWS, steps_per_part=steps_per_part)

    cost = pl.CostEstimate(flops=3 * total, transcendentals=0,
                           bytes_accessed=2 * total * elem_bytes)

    partial = pl.pallas_call(
        kernel,
        out_shape=jax.ShapeDtypeStruct((num_parts * _SUBLANES, _LANES),
                                       jnp.float32),
        grid_spec=pltpu.PrefetchScalarGridSpec(
            num_scalar_prefetch=0,
            grid=(num_parts, steps_per_part),
            in_specs=[
                pl.BlockSpec((block_rows, _LANES), in_map),
                pl.BlockSpec((block_rows, _LANES), in_map),
            ],
            out_specs=pl.BlockSpec((_SUBLANES, _LANES), lambda c, k: (c, 0)),
        ),
        compiler_params=pltpu.CompilerParams(
            # TODO(synk): verify on v7x (xprof) that the leading "parallel"
            # axis shards the two parts across both TensorCores; switch it to
            # pltpu.CORE_PARALLEL if it does not.
            dimension_semantics=("parallel", "arbitrary"),
            vmem_limit_bytes=vmem_limit_bytes,
        ),
        cost_estimate=cost,
    )(o2, t2)

    # Single cheap cross-lane reduction + batch normalization in the wrapper.
    return jnp.sum(partial) / batch


if __name__ == "__main__":
    key = jax.random.PRNGKey(0)
    k1, k2, k3, k4, k5, k6 = jax.random.split(key, 6)

    # 1) WS-DAN-style (batch, num_attentions, feat_dim); lane-aligned total
    #    (512 = 4*128) -> zero-copy path.  Force the Pallas path.
    b1 = 2
    o1 = jax.random.normal(k1, (b1, 8, 32), jnp.float32)
    t1 = jax.random.normal(k2, (b1, 8, 32), jnp.float32)
    got1 = jax.block_until_ready(center_loss(o1, t1, min_pallas_elems=0))
    ref1 = jnp.sum((o1 - t1) ** 2) / b1
    assert jnp.allclose(got1, ref1, rtol=1e-5, atol=1e-5), (got1, ref1)

    # 2) Larger, lane-aligned but not block-aligned (rows=250): exercises the
    #    multi-step reduction grid and the masked partial last block (tiny
    #    target_block_bytes forces several k steps).
    b2 = 4
    o2 = jax.random.normal(k3, (b2, 8, 1000), jnp.float32)
    t2 = jax.random.normal(k4, (b2, 8, 1000), jnp.float32)
    got2 = jax.block_until_ready(
        center_loss(o2, t2, min_pallas_elems=0, target_block_bytes=1))
    ref2 = jnp.sum((o2 - t2) ** 2) / b2
    assert jnp.allclose(got2, ref2, rtol=1e-5, atol=1e-3), (got2, ref2)

    # 3) Lane-unaligned total (42 elements): exercises the rare 128-granular
    #    pad branch.
    b3 = 2
    o3 = jax.random.normal(k5, (b3, 3, 7), jnp.float32)
    t3 = jax.random.normal(k6, (b3, 3, 7), jnp.float32)
    got3 = jax.block_until_ready(center_loss(o3, t3, min_pallas_elems=0))
    ref3 = jnp.sum((o3 - t3) ** 2) / b3
    assert jnp.allclose(got3, ref3, rtol=1e-5, atol=1e-5), (got3, ref3)

    # 4) bf16 inputs: in-kernel f32 upcast; 64-row blocks respect bf16 packing.
    o4 = o1.astype(jnp.bfloat16)
    t4 = t1.astype(jnp.bfloat16)
    got4 = jax.block_until_ready(center_loss(o4, t4, min_pallas_elems=0))
    ref4 = jnp.sum((o4.astype(jnp.float32) - t4.astype(jnp.float32)) ** 2) / b1
    assert jnp.allclose(got4, ref4, rtol=1e-5, atol=1e-3), (got4, ref4)

    print("KERNEL_OK")
</pallas_src>

<mosaic_0001>
module attributes {stable_mosaic.version = 11 : i64} {
  func.func @_center_loss_kernel(%arg0: i32, %arg1: i32, %arg2: memref<64x128xf32, #tpu.memory_space<vmem>>, %arg3: memref<64x128xf32, #tpu.memory_space<vmem>>, %arg4: memref<8x128xf32, #tpu.memory_space<vmem>>) attributes {dimension_semantics = [#tpu.dimension_semantics<parallel>, #tpu.dimension_semantics<arbitrary>], iteration_bounds = array<i64: 1, 1>, scalar_prefetch = 0 : i64, scratch_operands = 0 : i64, tpu.core_type = #tpu.core_type<tc>, window_params = [{transform_indices = @transform_0, window_bounds = array<i64: 64, 128>}, {transform_indices = @transform_1, window_bounds = array<i64: 64, 128>}, {transform_indices = @transform_2, window_bounds = array<i64: 8, 128>}]} {
    %c0_i32 = arith.constant 0 : i32
    %0 = arith.cmpi eq, %arg1, %c0_i32 : i32
    %1 = arith.extui %0 : i1 to i32
    %c0_i32_0 = arith.constant 0 : i32
    %2 = arith.cmpi ne, %1, %c0_i32_0 : i32
    scf.if %2 {
      %cst_11 = arith.constant 0.000000e+00 : f32
      %28 = vector.broadcast %cst_11 : f32 to vector<8x128xf32>
      %c0_12 = arith.constant 0 : index
      %c0_13 = arith.constant 0 : index
      %29 = vector.load %arg4[%c0_12, %c0_13] : memref<8x128xf32, #tpu.memory_space<vmem>>, vector<8x128xf32>
      tpu.vector_store %arg4[%c0_12, %c0_13], %28 {strides = array<i32>} : memref<8x128xf32, #tpu.memory_space<vmem>>, vector<8x128xf32>,
    } else {
    }
    %c1_i32 = arith.constant 1 : i32
    %3 = arith.muli %arg0, %c1_i32 : i32
    %4 = arith.addi %3, %arg1 : i32
    %c64_i32 = arith.constant 64 : i32
    %5 = arith.muli %4, %c64_i32 : i32
    %6 = tpu.iota {dimensions = array<i32: 0>} : vector<64x128xi32>
    %cst = arith.constant 0.000000e+00 : f32
    %7 = vector.broadcast %cst : f32 to vector<8x128xf32>
    %c0_i32_1 = arith.constant 0 : i32
    %c64_i32_2 = arith.constant 64 : i32
    %8 = arith.muli %c0_i32_1, %c64_i32_2 : i32
    %9 = tpu.assume_multiple %8, 64 : i32
    %10 = arith.index_cast %9 : i32 to index
    %c0 = arith.constant 0 : index
    %11 = vector.load %arg2[%10, %c0] : memref<64x128xf32, #tpu.memory_space<vmem>>, vector<64x128xf32>
    %12 = arith.index_cast %9 : i32 to index
    %c0_3 = arith.constant 0 : index
    %13 = vector.load %arg3[%12, %c0_3] : memref<64x128xf32, #tpu.memory_space<vmem>>, vector<64x128xf32>
    %14 = arith.subf %11, %13 : vector<64x128xf32>
    %15 = arith.mulf %14, %14 : vector<64x128xf32>
    %c4_i32 = arith.constant 4 : i32
    %16 = arith.subi %c4_i32, %5 : i32
    %17 = arith.subi %16, %9 : i32
    %18 = vector.broadcast %17 : i32 to vector<64x128xi32>
    %19 = arith.cmpi slt, %6, %18 : vector<64x128xi32>
    %cst_4 = arith.constant 0.000000e+00 : f32
    %20 = vector.broadcast %cst_4 : f32 to vector<64x128xf32>
    %21 = arith.select %19, %15, %20 : vector<64x128xi1>, vector<64x128xf32>
    %22 = vector.shape_cast %21 : vector<64x128xf32> to vector<8x8x128xf32>
    %cst_5 = arith.constant dense<0.000000e+00> : vector<8x128xf32>
    %23 = vector.multi_reduction <add>, %22, %cst_5 [0] : vector<8x8x128xf32> to vector<8x128xf32>
    %24 = arith.addf %7, %23 : vector<8x128xf32>
    %c1_i32_6 = arith.constant 1 : i32
    %c0_7 = arith.constant 0 : index
    %c0_8 = arith.constant 0 : index
    %25 = vector.load %arg4[%c0_7, %c0_8] : memref<8x128xf32, #tpu.memory_space<vmem>>, vector<8x128xf32>
    %26 = arith.addf %25, %24 : vector<8x128xf32>
    %c0_9 = arith.constant 0 : index
    %c0_10 = arith.constant 0 : index
    %27 = vector.load %arg4[%c0_9, %c0_10] : memref<8x128xf32, #tpu.memory_space<vmem>>, vector<8x128xf32>
    tpu.vector_store %arg4[%c0_9, %c0_10], %26 {strides = array<i32>} : memref<8x128xf32, #tpu.memory_space<vmem>>, vector<8x128xf32>,
    return
  }
  func.func @transform_0(%arg0: i32, %arg1: i32) -> (i32, i32) {
    %c1_i32 = arith.constant 1 : i32
    %0 = arith.muli %arg0, %c1_i32 : i32
    %1 = arith.addi %0, %arg1 : i32
    %c0_i32 = arith.constant 0 : i32
    %c0_i32_0 = arith.constant 0 : i32
    return %1, %c0_i32 : i32, i32
  }
  func.func @transform_1(%arg0: i32, %arg1: i32) -> (i32, i32) {
    %c1_i32 = arith.constant 1 : i32
    %0 = arith.muli %arg0, %c1_i32 : i32
    %1 = arith.addi %0, %arg1 : i32
    %c0_i32 = arith.constant 0 : i32
    %c0_i32_0 = arith.constant 0 : i32
    return %1, %c0_i32 : i32, i32
  }
  func.func @transform_2(%arg0: i32, %arg1: i32) -> (i32, i32) {
    %c0_i32 = arith.constant 0 : i32
    %c0_i32_0 = arith.constant 0 : i32
    return %arg0, %c0_i32 : i32, i32
  }
}

</mosaic_0001>

<llo_original>
// kernel: tpu_custom_call.1
$region0: #{tpu_custom_call.1}
  #allocation0 [shape = 'u32[]', space=smem, size = 0x4, offset = 0x4, fixed_abs, tag = 'smem constant byte address 0x4 - core index']
  #allocation1 [shape = 'u32[144,128]{1,0:T(1,128)}', space=vmem, size = 0x12000, scoped, tag = 'internal scratch']
  %s0 = inlined_call_operand.hbm [shape: f32[4,128], index: 0, kind: input, shape index: {}]
  %s1 = inlined_call_operand.hbm [shape: f32[4,128], index: 1, kind: input, shape index: {}]
  %s2 = inlined_call_operand.hbm [shape: f32[8,128], index: 2, kind: output, shape index: {}]
  %s3 = sld [smem:[#allocation0]]
  $region30: #{tpu_custom_call.1} parent=0
    _
  %s5 = ssub.s32 1, %s3
  %s6 = scalar_select 0, %s5, %s3
  $region1: #{tpu_custom_call.1} parent=0
    #allocation2 [shape = 'u8[32768]{0}', space=vmem, size = 0x8000, scoped, tag = 'input window, operand 0, single buffered']
    #allocation3 [shape = 's32[1]{0}', space=sflag, size = 0x4, scoped, tag = 'scoped memory for tpu_custom_call.1']
    #allocation4 [shape = 's32[1]{0}', space=sflag, size = 0x4, scoped, tag = 'scoped memory for tpu_custom_call.1']
    #allocation5 [shape = 'u8[32768]{0}', space=vmem, size = 0x8000, scoped, tag = 'input window, operand 1, single buffered']
    #allocation6 [shape = 's32[1]{0}', space=sflag, size = 0x4, scoped, tag = 'scoped memory for tpu_custom_call.1']
    #allocation7 [shape = 'u8[4096]{0}', space=vmem, size = 0x1000, scoped, tag = 'output window, operand 0, single buffered']
    %7 = vsyncpa [#allocation3], 0
    %8 = vsyncpa [#allocation6], 0
    %9 = vsyncpa [#allocation4], 0
    // Predicated region
    $region2: #{tpu_custom_call.1} parent=1 // pred_check
      _
    $region3: #{tpu_custom_call.1} parent=1 // pred_check_branch
      %11 = sbr.rel (0) target = $region5
    $region4: #{tpu_custom_call.1} parent=1 // pred_region
      %s12 = sadd.s32 0, 0
      %s13 = smul.u32 16, %s12
      %s14 = ssub.s32 1, %s13
      %s15 = smul.u32 64, %s14
      %s17 = ssub.s32 1024, %s15
      %18 = vsyncadd [#allocation3], %s17
      %p19 = scmp.ne.s32.totalorder 0, %s15
      %s20 = smul.addr %s13, 64
      %s21 = scalar_lea.hbm %s0, %s20
      %s22 = smul.u32 4, %s14
      %s23 = sshll.u32 [#allocation2], 4
      %s24 = int_to_ptr.vmem [resolvable:$true] %s23
      %s25 = sshll.u32 %s22, 4
      %29 = dma.hbm_to_vmem [thread:$0]  (%p19), %s21, %s25, %s24, [#allocation3], 64, 64, 4
    $region5: #{tpu_custom_call.1} parent=1 // pred_fallthru
      _
    // Predicated region
    $region6: #{tpu_custom_call.1} parent=1 // pred_check
      _
    $region7: #{tpu_custom_call.1} parent=1 // pred_check_branch
      %31 = sbr.rel (0) target = $region9
    $region8: #{tpu_custom_call.1} parent=1 // pred_region
      %s32 = sadd.s32 0, 0
      %s33 = smul.u32 16, %s32
      %s34 = ssub.s32 1, %s33
      %s35 = smul.u32 64, %s34
      %s37 = ssub.s32 1024, %s35
      %38 = vsyncadd [#allocation6], %s37
      %p39 = scmp.ne.s32.totalorder 0, %s35
      %s40 = smul.addr %s33, 64
      %s41 = scalar_lea.hbm %s1, %s40
      %s42 = smul.u32 4, %s34
      %s43 = sshll.u32 [#allocation5], 4
      %s44 = int_to_ptr.vmem [resolvable:$true] %s43
      %s45 = sshll.u32 %s42, 4
      %49 = dma.hbm_to_vmem [thread:$0]  (%p39), %s41, %s45, %s44, [#allocation6], 64, 64, 4
    $region9: #{tpu_custom_call.1} parent=1 // pred_fallthru
      _
    // Predicated region
    $region10: #{tpu_custom_call.1} parent=1 // pred_check
      _
    $region11: #{tpu_custom_call.1} parent=1 // pred_check_branch
      %51 = sbr.rel (0) target = $region13
    $region12: #{tpu_custom_call.1} parent=1 // pred_region
      %52 = dma.done [#allocation3], 1024
    $region13: #{tpu_custom_call.1} parent=1 // pred_fallthru
      _
    // Predicated region
    $region14: #{tpu_custom_call.1} parent=1 // pred_check
      _
    $region15: #{tpu_custom_call.1} parent=1 // pred_check_branch
      %54 = sbr.rel (0) target = $region17
    $region16: #{tpu_custom_call.1} parent=1 // pred_region
      %55 = dma.done [#allocation6], 1024
    $region17: #{tpu_custom_call.1} parent=1 // pred_fallthru
      _
    %s56 = sadd.s32 0, 0
    %s57 = smul.u32 16, %s56
    %s58 = ssub.s32 1, %s57
    %s59 = smul.u32 64, %s58
    %s60 = sadd.s32 0, 0
    %s61 = smul.u32 16, %s60
    %s62 = ssub.s32 1, %s61
    %s63 = smul.u32 64, %s62
    %p64 = scmp.eq.s32.totalorder 0, 0
    // Predicated region
    $region18: #{tpu_custom_call.1} parent=1 // pred_check
      %p65 = pneg %p64
    $region19: #{tpu_custom_call.1} parent=1 // pred_check_branch
      %67 = sbr.rel (%p65) target = $region21
    $region20: #{tpu_custom_call.1} parent=1 // pred_region
      %68 = vst [vmem:[#allocation7] sm:$0xff] 0.0
    $region21: #{tpu_custom_call.1} parent=1 // pred_fallthru
      _
    %s69 = sadd.s32 0, 0
    %s70 = smul.u32 %s69, 64
    %v71 = vlaneseq
    %v72 = vshrl.u32 %v71, 7
    %v73 = vadd.s32 %v72, 8
    %v74 = vadd.s32 %v72, 16
    %v75 = vadd.s32 %v72, 24
    %v76 = vadd.s32 %v72, 32
    %v77 = vadd.s32 %v72, 40
    %v78 = vadd.s32 %v72, 48
    %v79 = vadd.s32 %v72, 56
    %v80 = vld [vmem:[#allocation2] sm:$0xff]
    %v81 = vld [vmem:[#allocation2 + $0x8] sm:$0xff]
    %v82 = vld [vmem:[#allocation2 + $0x10] sm:$0xff]
    %v83 = vld [vmem:[#allocation2 + $0x18] sm:$0xff]
    %v84 = vld [vmem:[#allocation2 + $0x20] sm:$0xff]
    %v85 = vld [vmem:[#allocation2 + $0x28] sm:$0xff]
    %v86 = vld [vmem:[#allocation2 + $0x30] sm:$0xff]
    %v87 = vld [vmem:[#allocation2 + $0x38] sm:$0xff]
    %v88 = vld [vmem:[#allocation5] sm:$0xff]
    %v89 = vld [vmem:[#allocation5 + $0x8] sm:$0xff]
    %v90 = vld [vmem:[#allocation5 + $0x10] sm:$0xff]
    %v91 = vld [vmem:[#allocation5 + $0x18] sm:$0xff]
    %v92 = vld [vmem:[#allocation5 + $0x20] sm:$0xff]
    %v93 = vld [vmem:[#allocation5 + $0x28] sm:$0xff]
    %v94 = vld [vmem:[#allocation5 + $0x30] sm:$0xff]
    %v95 = vld [vmem:[#allocation5 + $0x38] sm:$0xff]
    %v96 = vsub.f32 %v80, %v88
    %v97 = vsub.f32 %v81, %v89
    %v98 = vsub.f32 %v82, %v90
    %v99 = vsub.f32 %v83, %v91
    %v100 = vsub.f32 %v84, %v92
    %v101 = vsub.f32 %v85, %v93
    %v102 = vsub.f32 %v86, %v94
    %v103 = vsub.f32 %v87, %v95
    %v104 = vmul.f32 %v96, %v96
    %v105 = vmul.f32 %v97, %v97
    %v106 = vmul.f32 %v98, %v98
    %v107 = vmul.f32 %v99, %v99
    %v108 = vmul.f32 %v100, %v100
    %v109 = vmul.f32 %v101, %v101
    %v110 = vmul.f32 %v102, %v102
    %v111 = vmul.f32 %v103, %v103
    %s112 = ssub.s32 4, %s70
    %s113 = ssub.s32 %s112, 0
    %v114 = vstv %s113
    %vm115 = vcmp.lt.s32.totalorder %v72, %v114
    %vm116 = vcmp.lt.s32.totalorder %v73, %v114
    %vm117 = vcmp.lt.s32.totalorder %v74, %v114
    %vm118 = vcmp.lt.s32.totalorder %v75, %v114
    %vm119 = vcmp.lt.s32.totalorder %v76, %v114
    %vm120 = vcmp.lt.s32.totalorder %v77, %v114
    %vm121 = vcmp.lt.s32.totalorder %v78, %v114
    %vm122 = vcmp.lt.s32.totalorder %v79, %v114
    %v123 = vsel %vm115, %v104, 0.0
    %v124 = vsel %vm116, %v105, 0.0
    %v125 = vsel %vm117, %v106, 0.0
    %v126 = vsel %vm118, %v107, 0.0
    %v127 = vsel %vm119, %v108, 0.0
    %v128 = vsel %vm120, %v109, 0.0
    %v129 = vsel %vm121, %v110, 0.0
    %v130 = vsel %vm122, %v111, 0.0
    %v131 = vadd.f32 %v123, %v124
    %v132 = vadd.f32 %v131, %v125
    %v133 = vadd.f32 %v132, %v126
    %v134 = vadd.f32 %v133, %v127
    %v135 = vadd.f32 %v134, %v128
    %v136 = vadd.f32 %v135, %v129
    %v137 = vadd.f32 %v136, %v130
    %v138 = vadd.f32 %v137, 0.0
    %v139 = vld [vmem:[#allocation7] sm:$0xff]
    %v140 = vadd.f32 %v139, %v138
    %141 = vst [vmem:[#allocation7] sm:$0xff] %v140
    // Predicated region
    $region22: #{tpu_custom_call.1} parent=1 // pred_check
      _
    $region23: #{tpu_custom_call.1} parent=1 // pred_check_branch
      %143 = sbr.rel (0) target = $region25
    $region24: #{tpu_custom_call.1} parent=1 // pred_region
      %s145 = ssub.s32 128, 128
      %146 = vsyncadd [#allocation4], %s145
      %s148 = sshll.u32 [#allocation7], 4
      %s149 = int_to_ptr.vmem [resolvable:$true] %s148
      %151 = dma.vmem_to_hbm [thread:$0]  %s149, 128, %s2, [#allocation4]
    $region25: #{tpu_custom_call.1} parent=1 // pred_fallthru
      _
    // Predicated region
    $region26: #{tpu_custom_call.1} parent=1 // pred_check
      _
    $region27: #{tpu_custom_call.1} parent=1 // pred_check_branch
      %153 = sbr.rel (0) target = $region29
    $region28: #{tpu_custom_call.1} parent=1 // pred_region
      %154 = dma.done [#allocation4], 128
    $region29: #{tpu_custom_call.1} parent=1 // pred_fallthru
      _
    %155 = vsyncpa [#allocation3], 1
    %156 = vsyncpa [#allocation6], 1
    %157 = vsyncpa [#allocation4], 1

</llo_original>
